<compile_context>
chip_gen: v5e
topology: v5e:2x2
jax: 0.10.0
libtpu: 0.0.40
codegen_flags: <defaults>
</compile_context>

<pallas_src>
import jax
import jax.numpy as jnp
from jax.experimental import pallas as pl
from jax.experimental.pallas import tpu as pltpu


def token_confidence_kernel(d0_ref, d1_ref, w_ref, b_ref, out0_ref, out1_ref):
    """Fused Linear(dim -> 1) + Sigmoid + squeeze(-1) for both descriptors.

    d0_ref, d1_ref : (TN, D) VMEM tiles of the two (flattened) descriptors
    w_ref          : (1, D)  VMEM, nn.Linear weight (resident across the grid)
    b_ref          : (1, 1)  SMEM, nn.Linear bias (f32)
    out0_ref/out1_ref : (1, TN) VMEM confidence tiles (lane-dense)
    """
    w = w_ref[0, :]              # (D,), descriptor dtype (no f32 upcast of tiles)
    b = b_ref[0, 0]              # f32 scalar from SMEM

    # desc0 path: VPU multiply in input dtype, f32 accumulation on the lane
    # reduce (XLU), sigmoid on the EUP -> (TN,), lane-dense store.
    x0 = d0_ref[...]                                              # (TN, D)
    logits0 = jnp.sum(x0 * w, axis=-1, dtype=jnp.float32) + b     # (TN,) f32
    out0_ref[0, :] = jax.nn.sigmoid(logits0).astype(out0_ref.dtype)

    # desc1 path (same weights, same tile index).
    x1 = d1_ref[...]                                              # (TN, D)
    logits1 = jnp.sum(x1 * w, axis=-1, dtype=jnp.float32) + b     # (TN,) f32
    out1_ref[0, :] = jax.nn.sigmoid(logits1).astype(out1_ref.dtype)


def _round_up(x, m):
    return ((x + m - 1) // m) * m


def _choose_tn(total_tokens, d, itemsize, *, vmem_budget_bytes=24 << 20,
               tn_cap=2048):
    """Pick a token tile against an explicit VMEM budget.

    Per-token VMEM footprint:
      2 inputs x 2 pipeline buffers x D x itemsize   (BlockSpec double-buffer)
    + ~4 x D x 4 B                                   (in-kernel f32 products)
    The 24 MiB budget stays under the 32 MiB scoped limit requested below on
    every generation (v5e/v6e/v7x).
    """
    per_token = 4 * d * itemsize + 4 * d * 4
    tn = (vmem_budget_bytes // per_token) // 128 * 128
    tn = max(128, min(tn, tn_cap))
    return min(tn, max(128, _round_up(total_tokens, 128)))


def token_confidence_forward(desc0, desc1, weight, bias, *, tn=None):
    """Equivalent of TokenConfidence.forward(desc0, desc1).

    desc0, desc1 : (B, N, D) descriptors
    weight       : (1, D)    nn.Linear(dim, 1) weight
    bias         : (1,)      nn.Linear(dim, 1) bias
    returns (conf0, conf1), each (B, N), in the descriptor dtype.
    """
    B, N, D = desc0.shape
    assert desc1.shape == (B, N, D)

    # Flatten (B, N) -> one token axis (free reshape): single long stream,
    # best megacore balance on v7x, and only ONE ragged tile at the very end.
    T = B * N
    d0 = desc0.reshape(T, D)
    d1 = desc1.reshape(T, D)

    itemsize = jnp.dtype(desc0.dtype).itemsize
    if tn is None:
        tn = _choose_tn(T, D, itemsize)
    else:
        tn = max(128, _round_up(tn, 128))
        tn = min(tn, max(128, _round_up(T, 128)))

    # Weight in the descriptor dtype (bf16 stays bf16), bias in f32 (SMEM).
    w = weight.reshape(1, D).astype(desc0.dtype)
    b2 = bias.reshape(1, 1).astype(jnp.float32)

    n_tiles = pl.cdiv(T, tn)
    out_shape = jax.ShapeDtypeStruct((1, T), desc0.dtype)

    # Advisory cost: bandwidth-bound op (2 descriptor reads dominate).
    cost = pl.CostEstimate(
        flops=4 * T * D,                 # mul + add per element, 2 descriptors
        transcendentals=2 * T,           # one sigmoid per token per descriptor
        bytes_accessed=2 * T * D * itemsize + D * itemsize + 2 * T * itemsize,
    )

    conf0, conf1 = pl.pallas_call(
        token_confidence_kernel,
        out_shape=(out_shape, out_shape),
        grid=(n_tiles,),                                         # ragged last tile OK
        in_specs=[
            pl.BlockSpec((tn, D), lambda t: (t, 0)),             # desc0 tile
            pl.BlockSpec((tn, D), lambda t: (t, 0)),             # desc1 tile
            pl.BlockSpec((1, D), lambda t: (0, 0)),              # weight (resident)
            pl.BlockSpec(memory_space=pltpu.MemorySpace.SMEM),   # bias scalar
        ],
        out_specs=(
            pl.BlockSpec((1, tn), lambda t: (0, t)),
            pl.BlockSpec((1, tn), lambda t: (0, t)),
        ),
        compiler_params=pltpu.CompilerParams(
            dimension_semantics=("parallel",),
            vmem_limit_bytes=32 << 20),
        cost_estimate=cost,
    )(d0, d1, w, b2)

    return conf0.reshape(B, N), conf1.reshape(B, N)


def _reference(desc, weight, bias):
    logits = jnp.einsum("bnd,od->bno", desc.astype(jnp.float32),
                        weight.astype(jnp.float32)) + bias
    return jax.nn.sigmoid(logits)[..., 0].astype(desc.dtype)


if __name__ == "__main__":
    # --- Small smoke test at module-consistent shapes -----------------------
    B, N, D = 2, 8, 32  # batch, tokens, feature dim

    key = jax.random.PRNGKey(0)
    k_w, k_b, k_d0, k_d1, k_e0, k_e1 = jax.random.split(key, 6)

    # Deterministic synthetic parameters for nn.Linear(dim, 1).
    bound = 1.0 / jnp.sqrt(D)
    weight = jax.random.uniform(k_w, (1, D), jnp.float32, -bound, bound)
    bias = jax.random.uniform(k_b, (1,), jnp.float32, -bound, bound)

    desc0 = jax.random.normal(k_d0, (B, N, D), jnp.float32)
    desc1 = jax.random.normal(k_d1, (B, N, D), jnp.float32)

    conf0, conf1 = token_confidence_forward(desc0, desc1, weight, bias)
    conf0 = jax.block_until_ready(conf0)
    conf1 = jax.block_until_ready(conf1)

    ref0 = _reference(desc0, weight, bias)
    ref1 = _reference(desc1, weight, bias)
    assert conf0.shape == (B, N) and conf1.shape == (B, N)
    assert jnp.allclose(conf0, ref0, atol=1e-5, rtol=1e-5)
    assert jnp.allclose(conf1, ref1, atol=1e-5, rtol=1e-5)

    # --- Ragged multi-tile test (T % tn != 0 across several tiles) ----------
    B2, N2, D2 = 1, 300, 64
    bound2 = 1.0 / jnp.sqrt(D2)
    w2 = jax.random.uniform(k_w, (1, D2), jnp.float32, -bound2, bound2)
    b2 = jax.random.uniform(k_b, (1,), jnp.float32, -bound2, bound2)
    e0 = jax.random.normal(k_e0, (B2, N2, D2), jnp.float32)
    e1 = jax.random.normal(k_e1, (B2, N2, D2), jnp.float32)

    c0, c1 = token_confidence_forward(e0, e1, w2, b2, tn=128)  # 3 tiles, last ragged
    c0 = jax.block_until_ready(c0)
    c1 = jax.block_until_ready(c1)
    assert jnp.allclose(c0, _reference(e0, w2, b2), atol=1e-5, rtol=1e-5)
    assert jnp.allclose(c1, _reference(e1, w2, b2), atol=1e-5, rtol=1e-5)

    # TODO(synk): TokenConfidence.loss (BCEWithLogitsLoss training path) is not
    # part of forward() and is not implemented here.
    print("KERNEL_OK")
</pallas_src>

<mosaic_0001>
module attributes {stable_mosaic.version = 11 : i64} {
  func.func @token_confidence_kernel(%arg0: i32, %arg1: memref<128x32xf32, #tpu.memory_space<vmem>>, %arg2: memref<128x32xf32, #tpu.memory_space<vmem>>, %arg3: memref<1x32xf32, #tpu.memory_space<vmem>>, %arg4: memref<1x1xf32, #tpu.memory_space<smem>>, %arg5: memref<1x128xf32, #tpu.memory_space<vmem>>, %arg6: memref<1x128xf32, #tpu.memory_space<vmem>>) attributes {dimension_semantics = [#tpu.dimension_semantics<parallel>], iteration_bounds = array<i64: 1>, scalar_prefetch = 0 : i64, scratch_operands = 0 : i64, tpu.core_type = #tpu.core_type<tc>, window_params = [{transform_indices = @transform_0, window_bounds = array<i64: 128, 32>}, {transform_indices = @transform_1, window_bounds = array<i64: 128, 32>}, {pipeline_mode = #tpu.pipeline_mode<synchronous>, transform_indices = @transform_2, window_bounds = array<i64: 1, 32>}, {transform_indices = @transform_3, window_bounds = array<i64: 1, 1>}, {transform_indices = @transform_4, window_bounds = array<i64: 1, 128>}, {transform_indices = @transform_5, window_bounds = array<i64: 1, 128>}]} {
    %c0 = arith.constant 0 : index
    %c0_0 = arith.constant 0 : index
    %0 = vector.load %arg3[%c0, %c0_0] : memref<1x32xf32, #tpu.memory_space<vmem>>, vector<1x32xf32>
    %1 = vector.shape_cast %0 : vector<1x32xf32> to vector<32xf32>
    %c0_1 = arith.constant 0 : index
    %c0_2 = arith.constant 0 : index
    %2 = memref.load %arg4[%c0_1, %c0_2] : memref<1x1xf32, #tpu.memory_space<smem>>
    %c0_3 = arith.constant 0 : index
    %c0_4 = arith.constant 0 : index
    %3 = vector.load %arg1[%c0_3, %c0_4] : memref<128x32xf32, #tpu.memory_space<vmem>>, vector<128x32xf32>
    %4 = vector.shape_cast %1 : vector<32xf32> to vector<1x32xf32>
    %5 = vector.broadcast %4 : vector<1x32xf32> to vector<128x32xf32>
    %6 = arith.mulf %3, %5 : vector<128x32xf32>
    %cst = arith.constant dense<0.000000e+00> : vector<128xf32>
    %7 = vector.multi_reduction <add>, %6, %cst [1] : vector<128x32xf32> to vector<128xf32>
    %8 = vector.broadcast %2 : f32 to vector<128xf32>
    %9 = arith.addf %7, %8 : vector<128xf32>
    %10 = arith.negf %9 : vector<128xf32>
    %11 = math.exp %10 : vector<128xf32>
    %cst_5 = arith.constant 1.000000e+00 : f32
    %12 = vector.broadcast %cst_5 : f32 to vector<128xf32>
    %13 = arith.addf %12, %11 : vector<128xf32>
    %14 = arith.divf %12, %13 : vector<128xf32>
    %c0_6 = arith.constant 0 : index
    %c0_7 = arith.constant 0 : index
    %15 = vector.load %arg5[%c0_6, %c0_7] : memref<1x128xf32, #tpu.memory_space<vmem>>, vector<1x128xf32>
    %16 = vector.shape_cast %15 : vector<1x128xf32> to vector<128xf32>
    %17 = vector.shape_cast %14 : vector<128xf32> to vector<1x128xf32>
    tpu.vector_store %arg5[%c0_6, %c0_7], %17 {strides = array<i32>} : memref<1x128xf32, #tpu.memory_space<vmem>>, vector<1x128xf32>,
    %c0_8 = arith.constant 0 : index
    %c0_9 = arith.constant 0 : index
    %18 = vector.load %arg2[%c0_8, %c0_9] : memref<128x32xf32, #tpu.memory_space<vmem>>, vector<128x32xf32>
    %19 = vector.shape_cast %1 : vector<32xf32> to vector<1x32xf32>
    %20 = vector.broadcast %19 : vector<1x32xf32> to vector<128x32xf32>
    %21 = arith.mulf %18, %20 : vector<128x32xf32>
    %cst_10 = arith.constant dense<0.000000e+00> : vector<128xf32>
    %22 = vector.multi_reduction <add>, %21, %cst_10 [1] : vector<128x32xf32> to vector<128xf32>
    %23 = vector.broadcast %2 : f32 to vector<128xf32>
    %24 = arith.addf %22, %23 : vector<128xf32>
    %25 = arith.negf %24 : vector<128xf32>
    %26 = math.exp %25 : vector<128xf32>
    %cst_11 = arith.constant 1.000000e+00 : f32
    %27 = vector.broadcast %cst_11 : f32 to vector<128xf32>
    %28 = arith.addf %27, %26 : vector<128xf32>
    %29 = arith.divf %27, %28 : vector<128xf32>
    %c0_12 = arith.constant 0 : index
    %c0_13 = arith.constant 0 : index
    %30 = vector.load %arg6[%c0_12, %c0_13] : memref<1x128xf32, #tpu.memory_space<vmem>>, vector<1x128xf32>
    %31 = vector.shape_cast %30 : vector<1x128xf32> to vector<128xf32>
    %32 = vector.shape_cast %29 : vector<128xf32> to vector<1x128xf32>
    tpu.vector_store %arg6[%c0_12, %c0_13], %32 {strides = array<i32>} : memref<1x128xf32, #tpu.memory_space<vmem>>, vector<1x128xf32>,
    return
  }
  func.func @transform_0(%arg0: i32) -> (i32, i32) {
    %c0_i32 = arith.constant 0 : i32
    %c0_i32_0 = arith.constant 0 : i32
    return %arg0, %c0_i32 : i32, i32
  }
  func.func @transform_1(%arg0: i32) -> (i32, i32) {
    %c0_i32 = arith.constant 0 : i32
    %c0_i32_0 = arith.constant 0 : i32
    return %arg0, %c0_i32 : i32, i32
  }
  func.func @transform_2(%arg0: i32) -> (i32, i32) {
    %c0_i32 = arith.constant 0 : i32
    %c0_i32_0 = arith.constant 0 : i32
    %c0_i32_1 = arith.constant 0 : i32
    return %c0_i32, %c0_i32_0 : i32, i32
  }
  func.func @transform_3(%arg0: i32) -> (i32, i32) {
    %c0_i32 = arith.constant 0 : i32
    %c0_i32_0 = arith.constant 0 : i32
    %c0_i32_1 = arith.constant 0 : i32
    return %c0_i32, %c0_i32_0 : i32, i32
  }
  func.func @transform_4(%arg0: i32) -> (i32, i32) {
    %c0_i32 = arith.constant 0 : i32
    %c0_i32_0 = arith.constant 0 : i32
    return %c0_i32, %arg0 : i32, i32
  }
  func.func @transform_5(%arg0: i32) -> (i32, i32) {
    %c0_i32 = arith.constant 0 : i32
    %c0_i32_0 = arith.constant 0 : i32
    return %c0_i32, %arg0 : i32, i32
  }
}

</mosaic_0001>

<llo_original>
// kernel: tpu_custom_call.1
$region0: #{tpu_custom_call.1}
  #allocation0 [shape = 'u32[]', space=smem, size = 0x4, offset = 0x4, fixed_abs, tag = 'smem constant byte address 0x4 - core index']
  #allocation1 [shape = 'u32[72,128]{1,0:T(1,128)}', space=vmem, size = 0x9000, scoped, tag = 'internal scratch']
  #allocation2 [shape = 'f32[1,1]{1,0:T(1,128)S(6)}', space=smem, size = 0x200, scoped, tag = 'scoped memory for tpu_custom_call.1']
  %s0 = inlined_call_operand.hbm [shape: f32[16,32], index: 0, kind: input, shape index: {}]
  %s1 = inlined_call_operand.hbm [shape: f32[16,32], index: 1, kind: input, shape index: {}]
  %s2 = inlined_call_operand.vmem [shape: f32[1,32], index: 2, kind: input, shape index: {}]
  %s3 = inlined_call_operand.<no memory space> [shape: f32[1,1], index: 3, kind: input, shape index: {}]
  %s4 = inlined_call_operand.hbm [shape: f32[1,16], index: 4, kind: output, shape index: {0}]
  %s5 = inlined_call_operand.hbm [shape: f32[1,16], index: 5, kind: output, shape index: {1}]
  %6 = xla_tuple %s4, %s5
  %s7 = sld [smem:[#allocation0]]
  $region42: #{tpu_custom_call.1} parent=0
    _
  %s9 = ssub.s32 1, %s7
  %s10 = scalar_select 0, %s9, %s7
  %11 = sst [smem:[#allocation2]] %s3
  $region1: #{tpu_custom_call.1} parent=0
    #allocation3 [shape = 'u8[65536]{0}', space=vmem, size = 0x10000, scoped, tag = 'input window, operand 0, single buffered']
    #allocation4 [shape = 's32[1]{0}', space=sflag, size = 0x4, scoped, tag = 'scoped memory for tpu_custom_call.1']
    #allocation5 [shape = 's32[1]{0}', space=sflag, size = 0x4, scoped, tag = 'scoped memory for tpu_custom_call.1']
    #allocation6 [shape = 'u8[65536]{0}', space=vmem, size = 0x10000, scoped, tag = 'input window, operand 1, single buffered']
    #allocation7 [shape = 's32[1]{0}', space=sflag, size = 0x4, scoped, tag = 'scoped memory for tpu_custom_call.1']
    #allocation8 [shape = 'u8[512]{0}', space=vmem, size = 0x400, scoped, tag = 'output window, operand 0, single buffered']
    #allocation9 [shape = 'u8[512]{0}', space=vmem, size = 0x400, scoped, tag = 'output window, operand 1, single buffered']
    #allocation10 [shape = 's32[1]{0}', space=sflag, size = 0x4, scoped, tag = 'scoped memory for tpu_custom_call.1']
    %12 = vsyncpa [#allocation4], 0
    %13 = vsyncpa [#allocation7], 0
    %14 = vsyncpa [#allocation5], 0
    %15 = vsyncpa [#allocation10], 0
    // Predicated region
    $region2: #{tpu_custom_call.1} parent=1 // pred_check
      _
    $region3: #{tpu_custom_call.1} parent=1 // pred_check_branch
      %17 = sbr.rel (0) target = $region5
    $region4: #{tpu_custom_call.1} parent=1 // pred_region
      %19 = vsyncadd [#allocation4], 1792
      %s20 = sshll.u32 %s0, 4
      %s21 = int_to_ptr.hbm [resolvable:$true] %s20
      %s22 = sshll.u32 [#allocation3], 4
      %s23 = int_to_ptr.vmem [resolvable:$true] %s22
      %28 = dma.hbm_to_vmem [thread:$0]  %s21, 256, %s23, [#allocation4], 128, 128, 8
    $region5: #{tpu_custom_call.1} parent=1 // pred_fallthru
      _
    // Predicated region
    $region6: #{tpu_custom_call.1} parent=1 // pred_check
      _
    $region7: #{tpu_custom_call.1} parent=1 // pred_check_branch
      %30 = sbr.rel (0) target = $region9
    $region8: #{tpu_custom_call.1} parent=1 // pred_region
      %32 = vsyncadd [#allocation7], 1792
      %s33 = sshll.u32 %s1, 4
      %s34 = int_to_ptr.hbm [resolvable:$true] %s33
      %s35 = sshll.u32 [#allocation6], 4
      %s36 = int_to_ptr.vmem [resolvable:$true] %s35
      %41 = dma.hbm_to_vmem [thread:$0]  %s34, 256, %s36, [#allocation7], 128, 128, 8
    $region9: #{tpu_custom_call.1} parent=1 // pred_fallthru
      _
    // Predicated region
    $region10: #{tpu_custom_call.1} parent=1 // pred_check
      _
    $region11: #{tpu_custom_call.1} parent=1 // pred_check_branch
      %43 = sbr.rel (0) target = $region13
    $region12: #{tpu_custom_call.1} parent=1 // pred_region
      _
    $region13: #{tpu_custom_call.1} parent=1 // pred_fallthru
      _
    // Predicated region
    $region14: #{tpu_custom_call.1} parent=1 // pred_check
      _
    $region15: #{tpu_custom_call.1} parent=1 // pred_check_branch
      %45 = sbr.rel (0) target = $region17
    $region16: #{tpu_custom_call.1} parent=1 // pred_region
      _
    $region17: #{tpu_custom_call.1} parent=1 // pred_fallthru
      _
    // Predicated region
    $region18: #{tpu_custom_call.1} parent=1 // pred_check
      _
    $region19: #{tpu_custom_call.1} parent=1 // pred_check_branch
      %47 = sbr.rel (0) target = $region21
    $region20: #{tpu_custom_call.1} parent=1 // pred_region
      %49 = dma.done [#allocation4], 2048
    $region21: #{tpu_custom_call.1} parent=1 // pred_fallthru
      _
    // Predicated region
    $region22: #{tpu_custom_call.1} parent=1 // pred_check
      _
    $region23: #{tpu_custom_call.1} parent=1 // pred_check_branch
      %51 = sbr.rel (0) target = $region25
    $region24: #{tpu_custom_call.1} parent=1 // pred_region
      %53 = dma.done [#allocation7], 2048
    $region25: #{tpu_custom_call.1} parent=1 // pred_fallthru
      _
    %v54 = vld [vmem:[%s2] sm:$0x1]
    %s55 = sld [smem:[#allocation2]]
    %v56 = vld [vmem:[#allocation3] sm:$0xff]
    %v57 = vld [vmem:[#allocation3 + $0x8] sm:$0xff]
    %v58 = vld [vmem:[#allocation3 + $0x10] sm:$0xff]
    %v59 = vld [vmem:[#allocation3 + $0x18] sm:$0xff]
    %v60 = vld [vmem:[#allocation3 + $0x20] sm:$0xff]
    %v61 = vld [vmem:[#allocation3 + $0x28] sm:$0xff]
    %v62 = vld [vmem:[#allocation3 + $0x30] sm:$0xff]
    %v63 = vld [vmem:[#allocation3 + $0x38] sm:$0xff]
    %v64 = vld [vmem:[#allocation3 + $0x40] sm:$0xff]
    %v65 = vld [vmem:[#allocation3 + $0x48] sm:$0xff]
    %v66 = vld [vmem:[#allocation3 + $0x50] sm:$0xff]
    %v67 = vld [vmem:[#allocation3 + $0x58] sm:$0xff]
    %v68 = vld [vmem:[#allocation3 + $0x60] sm:$0xff]
    %v69 = vld [vmem:[#allocation3 + $0x68] sm:$0xff]
    %v70 = vld [vmem:[#allocation3 + $0x70] sm:$0xff]
    %v71 = vld [vmem:[#allocation3 + $0x78] sm:$0xff]
    %v73 = vperm.slane %v54, 0
    %v75 = vmul.f32 %v56, %v73
    %v76 = vmul.f32 %v57, %v73
    %v77 = vmul.f32 %v58, %v73
    %v78 = vmul.f32 %v59, %v73
    %v79 = vmul.f32 %v60, %v73
    %v80 = vmul.f32 %v61, %v73
    %v81 = vmul.f32 %v62, %v73
    %v82 = vmul.f32 %v63, %v73
    %v83 = vmul.f32 %v64, %v73
    %v84 = vmul.f32 %v65, %v73
    %v85 = vmul.f32 %v66, %v73
    %v86 = vmul.f32 %v67, %v73
    %v87 = vmul.f32 %v68, %v73
    %v88 = vmul.f32 %v69, %v73
    %v89 = vmul.f32 %v70, %v73
    %v90 = vmul.f32 %v71, %v73
    %vm91 = vcmask 261120
    %v92 = vsel %vm91, %v75, 0.0
    %93 = vadd.xlane.f32.xlu0 %v92
    %v94 = vpop.xlane.xlu0 %93
    %v95 = vsel %vm91, %v76, 0.0
    %96 = vadd.xlane.f32.xlu0 %v95
    %v97 = vpop.xlane.xlu0 %96
    %v98 = vsel %vm91, %v77, 0.0
    %99 = vadd.xlane.f32.xlu0 %v98
    %v100 = vpop.xlane.xlu0 %99
    %v101 = vsel %vm91, %v78, 0.0
    %102 = vadd.xlane.f32.xlu0 %v101
    %v103 = vpop.xlane.xlu0 %102
    %v104 = vsel %vm91, %v79, 0.0
    %105 = vadd.xlane.f32.xlu0 %v104
    %v106 = vpop.xlane.xlu0 %105
    %v107 = vsel %vm91, %v80, 0.0
    %108 = vadd.xlane.f32.xlu0 %v107
    %v109 = vpop.xlane.xlu0 %108
    %v110 = vsel %vm91, %v81, 0.0
    %111 = vadd.xlane.f32.xlu0 %v110
    %v112 = vpop.xlane.xlu0 %111
    %v113 = vsel %vm91, %v82, 0.0
    %114 = vadd.xlane.f32.xlu0 %v113
    %v115 = vpop.xlane.xlu0 %114
    %v116 = vsel %vm91, %v83, 0.0
    %117 = vadd.xlane.f32.xlu0 %v116
    %v118 = vpop.xlane.xlu0 %117
    %v119 = vsel %vm91, %v84, 0.0
    %120 = vadd.xlane.f32.xlu0 %v119
    %v121 = vpop.xlane.xlu0 %120
    %v122 = vsel %vm91, %v85, 0.0
    %123 = vadd.xlane.f32.xlu0 %v122
    %v124 = vpop.xlane.xlu0 %123
    %v125 = vsel %vm91, %v86, 0.0
    %126 = vadd.xlane.f32.xlu0 %v125
    %v127 = vpop.xlane.xlu0 %126
    %v128 = vsel %vm91, %v87, 0.0
    %129 = vadd.xlane.f32.xlu0 %v128
    %v130 = vpop.xlane.xlu0 %129
    %v131 = vsel %vm91, %v88, 0.0
    %132 = vadd.xlane.f32.xlu0 %v131
    %v133 = vpop.xlane.xlu0 %132
    %v134 = vsel %vm91, %v89, 0.0
    %135 = vadd.xlane.f32.xlu0 %v134
    %v136 = vpop.xlane.xlu0 %135
    %v137 = vsel %vm91, %v90, 0.0
    %138 = vadd.xlane.f32.xlu0 %v137
    %v139 = vpop.xlane.xlu0 %138
    %v140 = vstv %s55
    %v141 = vadd.f32 %v94, %v140
    %v142 = vadd.f32 %v97, %v140
    %v143 = vadd.f32 %v100, %v140
    %v144 = vadd.f32 %v103, %v140
    %v145 = vadd.f32 %v106, %v140
    %v146 = vadd.f32 %v109, %v140
    %v147 = vadd.f32 %v112, %v140
    %v148 = vadd.f32 %v115, %v140
    %v149 = vadd.f32 %v118, %v140
    %v150 = vadd.f32 %v121, %v140
    %v151 = vadd.f32 %v124, %v140
    %v152 = vadd.f32 %v127, %v140
    %v153 = vadd.f32 %v130, %v140
    %v154 = vadd.f32 %v133, %v140
    %v155 = vadd.f32 %v136, %v140
    %v156 = vadd.f32 %v139, %v140
    %v157 = vxor.u32 %v141, 2147483648
    %v158 = vxor.u32 %v142, 2147483648
    %v159 = vxor.u32 %v143, 2147483648
    %v160 = vxor.u32 %v144, 2147483648
    %v161 = vxor.u32 %v145, 2147483648
    %v162 = vxor.u32 %v146, 2147483648
    %v163 = vxor.u32 %v147, 2147483648
    %v164 = vxor.u32 %v148, 2147483648
    %v165 = vxor.u32 %v149, 2147483648
    %v166 = vxor.u32 %v150, 2147483648
    %v167 = vxor.u32 %v151, 2147483648
    %v168 = vxor.u32 %v152, 2147483648
    %v169 = vxor.u32 %v153, 2147483648
    %v170 = vxor.u32 %v154, 2147483648
    %v171 = vxor.u32 %v155, 2147483648
    %v172 = vxor.u32 %v156, 2147483648
    %v173 = vmul.f32 %v157, 1.442695
    %v174 = vpow.pop %v173
    %v175 = vmul.f32 %v158, 1.442695
    %v176 = vpow.pop %v175
    %v177 = vmul.f32 %v159, 1.442695
    %v178 = vpow.pop %v177
    %v179 = vmul.f32 %v160, 1.442695
    %v180 = vpow.pop %v179
    %v181 = vmul.f32 %v161, 1.442695
    %v182 = vpow.pop %v181
    %v183 = vmul.f32 %v162, 1.442695
    %v184 = vpow.pop %v183
    %v185 = vmul.f32 %v163, 1.442695
    %v186 = vpow.pop %v185
    %v187 = vmul.f32 %v164, 1.442695
    %v188 = vpow.pop %v187
    %v189 = vmul.f32 %v165, 1.442695
    %v190 = vpow.pop %v189
    %v191 = vmul.f32 %v166, 1.442695
    %v192 = vpow.pop %v191
    %v193 = vmul.f32 %v167, 1.442695
    %v194 = vpow.pop %v193
    %v195 = vmul.f32 %v168, 1.442695
    %v196 = vpow.pop %v195
    %v197 = vmul.f32 %v169, 1.442695
    %v198 = vpow.pop %v197
    %v199 = vmul.f32 %v170, 1.442695
    %v200 = vpow.pop %v199
    %v201 = vmul.f32 %v171, 1.442695
    %v202 = vpow.pop %v201
    %v203 = vmul.f32 %v172, 1.442695
    %v204 = vpow.pop %v203
    %v205 = vadd.f32 %v174, 1.0
    %v206 = vadd.f32 %v176, 1.0
    %v207 = vadd.f32 %v178, 1.0
    %v208 = vadd.f32 %v180, 1.0
    %v209 = vadd.f32 %v182, 1.0
    %v210 = vadd.f32 %v184, 1.0
    %v211 = vadd.f32 %v186, 1.0
    %v212 = vadd.f32 %v188, 1.0
    %v213 = vadd.f32 %v190, 1.0
    %v214 = vadd.f32 %v192, 1.0
    %v215 = vadd.f32 %v194, 1.0
    %v216 = vadd.f32 %v196, 1.0
    %v217 = vadd.f32 %v198, 1.0
    %v218 = vadd.f32 %v200, 1.0
    %v219 = vadd.f32 %v202, 1.0
    %v220 = vadd.f32 %v204, 1.0
    %v221 = vrcp.pop %v205
    %v222 = vmul.f32 %v205, %v221
    %v223 = vsub.f32 1.0, %v222
    %v224 = vmul.f32 %v221, %v223
    %v225 = vadd.f32 %v221, %v224
    %vm226 = vweird.f32 %v205
    %vm227 = vweird.f32 %v221
    %vm228 = vmor %vm226, %vm227
    %v229 = vsel %vm228, %v221, %v225
    %v230 = vand.u32 2147483647, %v205
    %vm231 = vcmp.eq.f32.partialorder %v230, 8.507059e+37
    %v232 = vand.u32 %v205, 2147483648
    %v233 = vor.u32 1.1754944e-38, %v232
    %v234 = vsel %vm231, %v233, %v229
    %v235 = vmul.f32 1.0, %v234
    %v236 = vrcp.pop %v206
    %v237 = vmul.f32 %v206, %v236
    %v238 = vsub.f32 1.0, %v237
    %v239 = vmul.f32 %v236, %v238
    %v240 = vadd.f32 %v236, %v239
    %vm241 = vweird.f32 %v206
    %vm242 = vweird.f32 %v236
    %vm243 = vmor %vm241, %vm242
    %v244 = vsel %vm243, %v236, %v240
    %v245 = vand.u32 2147483647, %v206
    %vm246 = vcmp.eq.f32.partialorder %v245, 8.507059e+37
    %v247 = vand.u32 %v206, 2147483648
    %v248 = vor.u32 1.1754944e-38, %v247
    %v249 = vsel %vm246, %v248, %v244
    %v250 = vmul.f32 1.0, %v249
    %v251 = vrcp.pop %v207
    %v252 = vmul.f32 %v207, %v251
    %v253 = vsub.f32 1.0, %v252
    %v254 = vmul.f32 %v251, %v253
    %v255 = vadd.f32 %v251, %v254
    %vm256 = vweird.f32 %v207
    %vm257 = vweird.f32 %v251
    %vm258 = vmor %vm256, %vm257
    %v259 = vsel %vm258, %v251, %v255
    %v260 = vand.u32 2147483647, %v207
    %vm261 = vcmp.eq.f32.partialorder %v260, 8.507059e+37
    %v262 = vand.u32 %v207, 2147483648
    %v263 = vor.u32 1.1754944e-38, %v262
    %v264 = vsel %vm261, %v263, %v259
    %v265 = vmul.f32 1.0, %v264
    %v266 = vrcp.pop %v208
    %v267 = vmul.f32 %v208, %v266
    %v268 = vsub.f32 1.0, %v267
    %v269 = vmul.f32 %v266, %v268
    %v270 = vadd.f32 %v266, %v269
    %vm271 = vweird.f32 %v208
    %vm272 = vweird.f32 %v266
    %vm273 = vmor %vm271, %vm272
    %v274 = vsel %vm273, %v266, %v270
    %v275 = vand.u32 2147483647, %v208
    %vm276 = vcmp.eq.f32.partialorder %v275, 8.507059e+37
    %v277 = vand.u32 %v208, 2147483648
    %v278 = vor.u32 1.1754944e-38, %v277
    %v279 = vsel %vm276, %v278, %v274
    %v280 = vmul.f32 1.0, %v279
    %v281 = vrcp.pop %v209
    %v282 = vmul.f32 %v209, %v281
    %v283 = vsub.f32 1.0, %v282
    %v284 = vmul.f32 %v281, %v283
    %v285 = vadd.f32 %v281, %v284
    %vm286 = vweird.f32 %v209
    %vm287 = vweird.f32 %v281
    %vm288 = vmor %vm286, %vm287
    %v289 = vsel %vm288, %v281, %v285
    %v290 = vand.u32 2147483647, %v209
    %vm291 = vcmp.eq.f32.partialorder %v290, 8.507059e+37
    %v292 = vand.u32 %v209, 2147483648
    %v293 = vor.u32 1.1754944e-38, %v292
    %v294 = vsel %vm291, %v293, %v289
    %v295 = vmul.f32 1.0, %v294
    %v296 = vrcp.pop %v210
    %v297 = vmul.f32 %v210, %v296
    %v298 = vsub.f32 1.0, %v297
    %v299 = vmul.f32 %v296, %v298
    %v300 = vadd.f32 %v296, %v299
    %vm301 = vweird.f32 %v210
    %vm302 = vweird.f32 %v296
    %vm303 = vmor %vm301, %vm302
    %v304 = vsel %vm303, %v296, %v300
    %v305 = vand.u32 2147483647, %v210
    %vm306 = vcmp.eq.f32.partialorder %v305, 8.507059e+37
    %v307 = vand.u32 %v210, 2147483648
    %v308 = vor.u32 1.1754944e-38, %v307
    %v309 = vsel %vm306, %v308, %v304
    %v310 = vmul.f32 1.0, %v309
    %v311 = vrcp.pop %v211
    %v312 = vmul.f32 %v211, %v311
    %v313 = vsub.f32 1.0, %v312
    %v314 = vmul.f32 %v311, %v313
    %v315 = vadd.f32 %v311, %v314
    %vm316 = vweird.f32 %v211
    %vm317 = vweird.f32 %v311
    %vm318 = vmor %vm316, %vm317
    %v319 = vsel %vm318, %v311, %v315
    %v320 = vand.u32 2147483647, %v211
    %vm321 = vcmp.eq.f32.partialorder %v320, 8.507059e+37
    %v322 = vand.u32 %v211, 2147483648
    %v323 = vor.u32 1.1754944e-38, %v322
    %v324 = vsel %vm321, %v323, %v319
    %v325 = vmul.f32 1.0, %v324
    %v326 = vrcp.pop %v212
    %v327 = vmul.f32 %v212, %v326
    %v328 = vsub.f32 1.0, %v327
    %v329 = vmul.f32 %v326, %v328
    %v330 = vadd.f32 %v326, %v329
    %vm331 = vweird.f32 %v212
    %vm332 = vweird.f32 %v326
    %vm333 = vmor %vm331, %vm332
    %v334 = vsel %vm333, %v326, %v330
    %v335 = vand.u32 2147483647, %v212
    %vm336 = vcmp.eq.f32.partialorder %v335, 8.507059e+37
    %v337 = vand.u32 %v212, 2147483648
    %v338 = vor.u32 1.1754944e-38, %v337
    %v339 = vsel %vm336, %v338, %v334
    %v340 = vmul.f32 1.0, %v339
    %v341 = vrcp.pop %v213
    %v342 = vmul.f32 %v213, %v341
    %v343 = vsub.f32 1.0, %v342
    %v344 = vmul.f32 %v341, %v343
    %v345 = vadd.f32 %v341, %v344
    %vm346 = vweird.f32 %v213
    %vm347 = vweird.f32 %v341
    %vm348 = vmor %vm346, %vm347
    %v349 = vsel %vm348, %v341, %v345
    %v350 = vand.u32 2147483647, %v213
    %vm351 = vcmp.eq.f32.partialorder %v350, 8.507059e+37
    %v352 = vand.u32 %v213, 2147483648
    %v353 = vor.u32 1.1754944e-38, %v352
    %v354 = vsel %vm351, %v353, %v349
    %v355 = vmul.f32 1.0, %v354
    %v356 = vrcp.pop %v214
    %v357 = vmul.f32 %v214, %v356
    %v358 = vsub.f32 1.0, %v357
    %v359 = vmul.f32 %v356, %v358
    %v360 = vadd.f32 %v356, %v359
    %vm361 = vweird.f32 %v214
    %vm362 = vweird.f32 %v356
    %vm363 = vmor %vm361, %vm362
    %v364 = vsel %vm363, %v356, %v360
    %v365 = vand.u32 2147483647, %v214
    %vm366 = vcmp.eq.f32.partialorder %v365, 8.507059e+37
    %v367 = vand.u32 %v214, 2147483648
    %v368 = vor.u32 1.1754944e-38, %v367
    %v369 = vsel %vm366, %v368, %v364
    %v370 = vmul.f32 1.0, %v369
    %v371 = vrcp.pop %v215
    %v372 = vmul.f32 %v215, %v371
    %v373 = vsub.f32 1.0, %v372
    %v374 = vmul.f32 %v371, %v373
    %v375 = vadd.f32 %v371, %v374
    %vm376 = vweird.f32 %v215
    %vm377 = vweird.f32 %v371
    %vm378 = vmor %vm376, %vm377
    %v379 = vsel %vm378, %v371, %v375
    %v380 = vand.u32 2147483647, %v215
    %vm381 = vcmp.eq.f32.partialorder %v380, 8.507059e+37
    %v382 = vand.u32 %v215, 2147483648
    %v383 = vor.u32 1.1754944e-38, %v382
    %v384 = vsel %vm381, %v383, %v379
    %v385 = vmul.f32 1.0, %v384
    %v386 = vrcp.pop %v216
    %v387 = vmul.f32 %v216, %v386
    %v388 = vsub.f32 1.0, %v387
    %v389 = vmul.f32 %v386, %v388
    %v390 = vadd.f32 %v386, %v389
    %vm391 = vweird.f32 %v216
    %vm392 = vweird.f32 %v386
    %vm393 = vmor %vm391, %vm392
    %v394 = vsel %vm393, %v386, %v390
    %v395 = vand.u32 2147483647, %v216
    %vm396 = vcmp.eq.f32.partialorder %v395, 8.507059e+37
    %v397 = vand.u32 %v216, 2147483648
    %v398 = vor.u32 1.1754944e-38, %v397
    %v399 = vsel %vm396, %v398, %v394
    %v400 = vmul.f32 1.0, %v399
    %v401 = vrcp.pop %v217
    %v402 = vmul.f32 %v217, %v401
    %v403 = vsub.f32 1.0, %v402
    %v404 = vmul.f32 %v401, %v403
    %v405 = vadd.f32 %v401, %v404
    %vm406 = vweird.f32 %v217
    %vm407 = vweird.f32 %v401
    %vm408 = vmor %vm406, %vm407
    %v409 = vsel %vm408, %v401, %v405
    %v410 = vand.u32 2147483647, %v217
    %vm411 = vcmp.eq.f32.partialorder %v410, 8.507059e+37
    %v412 = vand.u32 %v217, 2147483648
    %v413 = vor.u32 1.1754944e-38, %v412
    %v414 = vsel %vm411, %v413, %v409
    %v415 = vmul.f32 1.0, %v414
    %v416 = vrcp.pop %v218
    %v417 = vmul.f32 %v218, %v416
    %v418 = vsub.f32 1.0, %v417
    %v419 = vmul.f32 %v416, %v418
    %v420 = vadd.f32 %v416, %v419
    %vm421 = vweird.f32 %v218
    %vm422 = vweird.f32 %v416
    %vm423 = vmor %vm421, %vm422
    %v424 = vsel %vm423, %v416, %v420
    %v425 = vand.u32 2147483647, %v218
    %vm426 = vcmp.eq.f32.partialorder %v425, 8.507059e+37
    %v427 = vand.u32 %v218, 2147483648
    %v428 = vor.u32 1.1754944e-38, %v427
    %v429 = vsel %vm426, %v428, %v424
    %v430 = vmul.f32 1.0, %v429
    %v431 = vrcp.pop %v219
    %v432 = vmul.f32 %v219, %v431
    %v433 = vsub.f32 1.0, %v432
    %v434 = vmul.f32 %v431, %v433
    %v435 = vadd.f32 %v431, %v434
    %vm436 = vweird.f32 %v219
    %vm437 = vweird.f32 %v431
    %vm438 = vmor %vm436, %vm437
    %v439 = vsel %vm438, %v431, %v435
    %v440 = vand.u32 2147483647, %v219
    %vm441 = vcmp.eq.f32.partialorder %v440, 8.507059e+37
    %v442 = vand.u32 %v219, 2147483648
    %v443 = vor.u32 1.1754944e-38, %v442
    %v444 = vsel %vm441, %v443, %v439
    %v445 = vmul.f32 1.0, %v444
    %v446 = vrcp.pop %v220
    %v447 = vmul.f32 %v220, %v446
    %v448 = vsub.f32 1.0, %v447
    %v449 = vmul.f32 %v446, %v448
    %v450 = vadd.f32 %v446, %v449
    %vm451 = vweird.f32 %v220
    %vm452 = vweird.f32 %v446
    %vm453 = vmor %vm451, %vm452
    %v454 = vsel %vm453, %v446, %v450
    %v455 = vand.u32 2147483647, %v220
    %vm456 = vcmp.eq.f32.partialorder %v455, 8.507059e+37
    %v457 = vand.u32 %v220, 2147483648
    %v458 = vor.u32 1.1754944e-38, %v457
    %v459 = vsel %vm456, %v458, %v454
    %v460 = vmul.f32 1.0, %v459
    %v477 = vlaneseq
    %v478 = vand.u32 %v477, 127
    %v479 = vperm.slane %v235, %v478
    %v480 = vadd.s32 %v478, 4294967288
    %v481 = vperm.slane %v250, %v480
    %vm482 = vcmask 130112
    %v483 = vsel %vm482, %v481, %v479
    %v484 = vadd.s32 %v478, 4294967280
    %v485 = vperm.slane %v265, %v484
    %vm486 = vcmask 195712
    %v487 = vsel %vm486, %v485, %v483
    %v488 = vadd.s32 %v478, 4294967272
    %v489 = vperm.slane %v280, %v488
    %vm490 = vcmask 261312
    %v491 = vsel %vm490, %v489, %v487
    %v492 = vadd.s32 %v478, 4294967264
    %v493 = vperm.slane %v295, %v492
    %vm494 = vcmask 326912
    %v495 = vsel %vm494, %v493, %v491
    %v496 = vadd.s32 %v478, 4294967256
    %v497 = vperm.slane %v310, %v496
    %vm498 = vcmask 392512
    %v499 = vsel %vm498, %v497, %v495
    %v500 = vadd.s32 %v478, 4294967248
    %v501 = vperm.slane %v325, %v500
    %vm502 = vcmask 458112
    %v503 = vsel %vm502, %v501, %v499
    %v504 = vadd.s32 %v478, 4294967240
    %v505 = vperm.slane %v340, %v504
    %vm506 = vcmask 523712
    %v507 = vsel %vm506, %v505, %v503
    %v508 = vadd.s32 %v478, 4294967232
    %v509 = vperm.slane %v355, %v508
    %vm510 = vcmask 589312
    %v511 = vsel %vm510, %v509, %v507
    %v512 = vadd.s32 %v478, 4294967224
    %v513 = vperm.slane %v370, %v512
    %vm514 = vcmask 654912
    %v515 = vsel %vm514, %v513, %v511
    %v516 = vadd.s32 %v478, 4294967216
    %v517 = vperm.slane %v385, %v516
    %vm518 = vcmask 720512
    %v519 = vsel %vm518, %v517, %v515
    %v520 = vadd.s32 %v478, 4294967208
    %v521 = vperm.slane %v400, %v520
    %vm522 = vcmask 786112
    %v523 = vsel %vm522, %v521, %v519
    %v524 = vadd.s32 %v478, 4294967200
    %v525 = vperm.slane %v415, %v524
    %vm526 = vcmask 851712
    %v527 = vsel %vm526, %v525, %v523
    %v528 = vadd.s32 %v478, 4294967192
    %v529 = vperm.slane %v430, %v528
    %vm530 = vcmask 917312
    %v531 = vsel %vm530, %v529, %v527
    %v532 = vadd.s32 %v478, 4294967184
    %v533 = vperm.slane %v445, %v532
    %vm534 = vcmask 982912
    %v535 = vsel %vm534, %v533, %v531
    %v536 = vadd.s32 %v478, 4294967176
    %v537 = vperm.slane %v460, %v536
    %vm538 = vcmask 1048512
    %v539 = vsel %vm538, %v537, %v535
    %541 = vst [vmem:[#allocation8] sm:$0x1] %v539
    %v542 = vld [vmem:[#allocation6] sm:$0xff]
    %v543 = vld [vmem:[#allocation6 + $0x8] sm:$0xff]
    %v544 = vld [vmem:[#allocation6 + $0x10] sm:$0xff]
    %v545 = vld [vmem:[#allocation6 + $0x18] sm:$0xff]
    %v546 = vld [vmem:[#allocation6 + $0x20] sm:$0xff]
    %v547 = vld [vmem:[#allocation6 + $0x28] sm:$0xff]
    %v548 = vld [vmem:[#allocation6 + $0x30] sm:$0xff]
    %v549 = vld [vmem:[#allocation6 + $0x38] sm:$0xff]
    %v550 = vld [vmem:[#allocation6 + $0x40] sm:$0xff]
    %v551 = vld [vmem:[#allocation6 + $0x48] sm:$0xff]
    %v552 = vld [vmem:[#allocation6 + $0x50] sm:$0xff]
    %v553 = vld [vmem:[#allocation6 + $0x58] sm:$0xff]
    %v554 = vld [vmem:[#allocation6 + $0x60] sm:$0xff]
    %v555 = vld [vmem:[#allocation6 + $0x68] sm:$0xff]
    %v556 = vld [vmem:[#allocation6 + $0x70] sm:$0xff]
    %v557 = vld [vmem:[#allocation6 + $0x78] sm:$0xff]
    %v558 = vmul.f32 %v542, %v73
    %v559 = vmul.f32 %v543, %v73
    %v560 = vmul.f32 %v544, %v73
    %v561 = vmul.f32 %v545, %v73
    %v562 = vmul.f32 %v546, %v73
    %v563 = vmul.f32 %v547, %v73
    %v564 = vmul.f32 %v548, %v73
    %v565 = vmul.f32 %v549, %v73
    %v566 = vmul.f32 %v550, %v73
    %v567 = vmul.f32 %v551, %v73
    %v568 = vmul.f32 %v552, %v73
    %v569 = vmul.f32 %v553, %v73
    %v570 = vmul.f32 %v554, %v73
    %v571 = vmul.f32 %v555, %v73
    %v572 = vmul.f32 %v556, %v73
    %v573 = vmul.f32 %v557, %v73
    %v574 = vsel %vm91, %v558, 0.0
    %575 = vadd.xlane.f32.xlu0 %v574
    %v576 = vpop.xlane.xlu0 %575
    %v577 = vsel %vm91, %v559, 0.0
    %578 = vadd.xlane.f32.xlu0 %v577
    %v579 = vpop.xlane.xlu0 %578
    %v580 = vsel %vm91, %v560, 0.0
    %581 = vadd.xlane.f32.xlu0 %v580
    %v582 = vpop.xlane.xlu0 %581
    %v583 = vsel %vm91, %v561, 0.0
    %584 = vadd.xlane.f32.xlu0 %v583
    %v585 = vpop.xlane.xlu0 %584
    %v586 = vsel %vm91, %v562, 0.0
    %587 = vadd.xlane.f32.xlu0 %v586
    %v588 = vpop.xlane.xlu0 %587
    %v589 = vsel %vm91, %v563, 0.0
    %590 = vadd.xlane.f32.xlu0 %v589
    %v591 = vpop.xlane.xlu0 %590
    %v592 = vsel %vm91, %v564, 0.0
    %593 = vadd.xlane.f32.xlu0 %v592
    %v594 = vpop.xlane.xlu0 %593
    %v595 = vsel %vm91, %v565, 0.0
    %596 = vadd.xlane.f32.xlu0 %v595
    %v597 = vpop.xlane.xlu0 %596
    %v598 = vsel %vm91, %v566, 0.0
    %599 = vadd.xlane.f32.xlu0 %v598
    %v600 = vpop.xlane.xlu0 %599
    %v601 = vsel %vm91, %v567, 0.0
    %602 = vadd.xlane.f32.xlu0 %v601
    %v603 = vpop.xlane.xlu0 %602
    %v604 = vsel %vm91, %v568, 0.0
    %605 = vadd.xlane.f32.xlu0 %v604
    %v606 = vpop.xlane.xlu0 %605
    %v607 = vsel %vm91, %v569, 0.0
    %608 = vadd.xlane.f32.xlu0 %v607
    %v609 = vpop.xlane.xlu0 %608
    %v610 = vsel %vm91, %v570, 0.0
    %611 = vadd.xlane.f32.xlu0 %v610
    %v612 = vpop.xlane.xlu0 %611
    %v613 = vsel %vm91, %v571, 0.0
    %614 = vadd.xlane.f32.xlu0 %v613
    %v615 = vpop.xlane.xlu0 %614
    %v616 = vsel %vm91, %v572, 0.0
    %617 = vadd.xlane.f32.xlu0 %v616
    %v618 = vpop.xlane.xlu0 %617
    %v619 = vsel %vm91, %v573, 0.0
    %620 = vadd.xlane.f32.xlu0 %v619
    %v621 = vpop.xlane.xlu0 %620
    %v622 = vadd.f32 %v576, %v140
    %v623 = vadd.f32 %v579, %v140
    %v624 = vadd.f32 %v582, %v140
    %v625 = vadd.f32 %v585, %v140
    %v626 = vadd.f32 %v588, %v140
    %v627 = vadd.f32 %v591, %v140
    %v628 = vadd.f32 %v594, %v140
    %v629 = vadd.f32 %v597, %v140
    %v630 = vadd.f32 %v600, %v140
    %v631 = vadd.f32 %v603, %v140
    %v632 = vadd.f32 %v606, %v140
    %v633 = vadd.f32 %v609, %v140
    %v634 = vadd.f32 %v612, %v140
    %v635 = vadd.f32 %v615, %v140
    %v636 = vadd.f32 %v618, %v140
    %v637 = vadd.f32 %v621, %v140
    %v638 = vxor.u32 %v622, 2147483648
    %v639 = vxor.u32 %v623, 2147483648
    %v640 = vxor.u32 %v624, 2147483648
    %v641 = vxor.u32 %v625, 2147483648
    %v642 = vxor.u32 %v626, 2147483648
    %v643 = vxor.u32 %v627, 2147483648
    %v644 = vxor.u32 %v628, 2147483648
    %v645 = vxor.u32 %v629, 2147483648
    %v646 = vxor.u32 %v630, 2147483648
    %v647 = vxor.u32 %v631, 2147483648
    %v648 = vxor.u32 %v632, 2147483648
    %v649 = vxor.u32 %v633, 2147483648
    %v650 = vxor.u32 %v634, 2147483648
    %v651 = vxor.u32 %v635, 2147483648
    %v652 = vxor.u32 %v636, 2147483648
    %v653 = vxor.u32 %v637, 2147483648
    %v654 = vmul.f32 %v638, 1.442695
    %v655 = vpow.pop %v654
    %v656 = vmul.f32 %v639, 1.442695
    %v657 = vpow.pop %v656
    %v658 = vmul.f32 %v640, 1.442695
    %v659 = vpow.pop %v658
    %v660 = vmul.f32 %v641, 1.442695
    %v661 = vpow.pop %v660
    %v662 = vmul.f32 %v642, 1.442695
    %v663 = vpow.pop %v662
    %v664 = vmul.f32 %v643, 1.442695
    %v665 = vpow.pop %v664
    %v666 = vmul.f32 %v644, 1.442695
    %v667 = vpow.pop %v666
    %v668 = vmul.f32 %v645, 1.442695
    %v669 = vpow.pop %v668
    %v670 = vmul.f32 %v646, 1.442695
    %v671 = vpow.pop %v670
    %v672 = vmul.f32 %v647, 1.442695
    %v673 = vpow.pop %v672
    %v674 = vmul.f32 %v648, 1.442695
    %v675 = vpow.pop %v674
    %v676 = vmul.f32 %v649, 1.442695
    %v677 = vpow.pop %v676
    %v678 = vmul.f32 %v650, 1.442695
    %v679 = vpow.pop %v678
    %v680 = vmul.f32 %v651, 1.442695
    %v681 = vpow.pop %v680
    %v682 = vmul.f32 %v652, 1.442695
    %v683 = vpow.pop %v682
    %v684 = vmul.f32 %v653, 1.442695
    %v685 = vpow.pop %v684
    %v686 = vadd.f32 %v655, 1.0
    %v687 = vadd.f32 %v657, 1.0
    %v688 = vadd.f32 %v659, 1.0
    %v689 = vadd.f32 %v661, 1.0
    %v690 = vadd.f32 %v663, 1.0
    %v691 = vadd.f32 %v665, 1.0
    %v692 = vadd.f32 %v667, 1.0
    %v693 = vadd.f32 %v669, 1.0
    %v694 = vadd.f32 %v671, 1.0
    %v695 = vadd.f32 %v673, 1.0
    %v696 = vadd.f32 %v675, 1.0
    %v697 = vadd.f32 %v677, 1.0
    %v698 = vadd.f32 %v679, 1.0
    %v699 = vadd.f32 %v681, 1.0
    %v700 = vadd.f32 %v683, 1.0
    %v701 = vadd.f32 %v685, 1.0
    %v702 = vrcp.pop %v686
    %v703 = vmul.f32 %v686, %v702
    %v704 = vsub.f32 1.0, %v703
    %v705 = vmul.f32 %v702, %v704
    %v706 = vadd.f32 %v702, %v705
    %vm707 = vweird.f32 %v686
    %vm708 = vweird.f32 %v702
    %vm709 = vmor %vm707, %vm708
    %v710 = vsel %vm709, %v702, %v706
    %v711 = vand.u32 2147483647, %v686
    %vm712 = vcmp.eq.f32.partialorder %v711, 8.507059e+37
    %v713 = vand.u32 %v686, 2147483648
    %v714 = vor.u32 1.1754944e-38, %v713
    %v715 = vsel %vm712, %v714, %v710
    %v716 = vmul.f32 1.0, %v715
    %v717 = vrcp.pop %v687
    %v718 = vmul.f32 %v687, %v717
    %v719 = vsub.f32 1.0, %v718
    %v720 = vmul.f32 %v717, %v719
    %v721 = vadd.f32 %v717, %v720
    %vm722 = vweird.f32 %v687
    %vm723 = vweird.f32 %v717
    %vm724 = vmor %vm722, %vm723
    %v725 = vsel %vm724, %v717, %v721
    %v726 = vand.u32 2147483647, %v687
    %vm727 = vcmp.eq.f32.partialorder %v726, 8.507059e+37
    %v728 = vand.u32 %v687, 2147483648
    %v729 = vor.u32 1.1754944e-38, %v728
    %v730 = vsel %vm727, %v729, %v725
    %v731 = vmul.f32 1.0, %v730
    %v732 = vrcp.pop %v688
    %v733 = vmul.f32 %v688, %v732
    %v734 = vsub.f32 1.0, %v733
    %v735 = vmul.f32 %v732, %v734
    %v736 = vadd.f32 %v732, %v735
    %vm737 = vweird.f32 %v688
    %vm738 = vweird.f32 %v732
    %vm739 = vmor %vm737, %vm738
    %v740 = vsel %vm739, %v732, %v736
    %v741 = vand.u32 2147483647, %v688
    %vm742 = vcmp.eq.f32.partialorder %v741, 8.507059e+37
    %v743 = vand.u32 %v688, 2147483648
    %v744 = vor.u32 1.1754944e-38, %v743
    %v745 = vsel %vm742, %v744, %v740
    %v746 = vmul.f32 1.0, %v745
    %v747 = vrcp.pop %v689
    %v748 = vmul.f32 %v689, %v747
    %v749 = vsub.f32 1.0, %v748
    %v750 = vmul.f32 %v747, %v749
    %v751 = vadd.f32 %v747, %v750
    %vm752 = vweird.f32 %v689
    %vm753 = vweird.f32 %v747
    %vm754 = vmor %vm752, %vm753
    %v755 = vsel %vm754, %v747, %v751
    %v756 = vand.u32 2147483647, %v689
    %vm757 = vcmp.eq.f32.partialorder %v756, 8.507059e+37
    %v758 = vand.u32 %v689, 2147483648
    %v759 = vor.u32 1.1754944e-38, %v758
    %v760 = vsel %vm757, %v759, %v755
    %v761 = vmul.f32 1.0, %v760
    %v762 = vrcp.pop %v690
    %v763 = vmul.f32 %v690, %v762
    %v764 = vsub.f32 1.0, %v763
    %v765 = vmul.f32 %v762, %v764
    %v766 = vadd.f32 %v762, %v765
    %vm767 = vweird.f32 %v690
    %vm768 = vweird.f32 %v762
    %vm769 = vmor %vm767, %vm768
    %v770 = vsel %vm769, %v762, %v766
    %v771 = vand.u32 2147483647, %v690
    %vm772 = vcmp.eq.f32.partialorder %v771, 8.507059e+37
    %v773 = vand.u32 %v690, 2147483648
    %v774 = vor.u32 1.1754944e-38, %v773
    %v775 = vsel %vm772, %v774, %v770
    %v776 = vmul.f32 1.0, %v775
    %v777 = vrcp.pop %v691
    %v778 = vmul.f32 %v691, %v777
    %v779 = vsub.f32 1.0, %v778
    %v780 = vmul.f32 %v777, %v779
    %v781 = vadd.f32 %v777, %v780
    %vm782 = vweird.f32 %v691
    %vm783 = vweird.f32 %v777
    %vm784 = vmor %vm782, %vm783
    %v785 = vsel %vm784, %v777, %v781
    %v786 = vand.u32 2147483647, %v691
    %vm787 = vcmp.eq.f32.partialorder %v786, 8.507059e+37
    %v788 = vand.u32 %v691, 2147483648
    %v789 = vor.u32 1.1754944e-38, %v788
    %v790 = vsel %vm787, %v789, %v785
    %v791 = vmul.f32 1.0, %v790
    %v792 = vrcp.pop %v692
    %v793 = vmul.f32 %v692, %v792
    %v794 = vsub.f32 1.0, %v793
    %v795 = vmul.f32 %v792, %v794
    %v796 = vadd.f32 %v792, %v795
    %vm797 = vweird.f32 %v692
    %vm798 = vweird.f32 %v792
    %vm799 = vmor %vm797, %vm798
    %v800 = vsel %vm799, %v792, %v796
    %v801 = vand.u32 2147483647, %v692
    %vm802 = vcmp.eq.f32.partialorder %v801, 8.507059e+37
    %v803 = vand.u32 %v692, 2147483648
    %v804 = vor.u32 1.1754944e-38, %v803
    %v805 = vsel %vm802, %v804, %v800
    %v806 = vmul.f32 1.0, %v805
    %v807 = vrcp.pop %v693
    %v808 = vmul.f32 %v693, %v807
    %v809 = vsub.f32 1.0, %v808
    %v810 = vmul.f32 %v807, %v809
    %v811 = vadd.f32 %v807, %v810
    %vm812 = vweird.f32 %v693
    %vm813 = vweird.f32 %v807
    %vm814 = vmor %vm812, %vm813
    %v815 = vsel %vm814, %v807, %v811
    %v816 = vand.u32 2147483647, %v693
    %vm817 = vcmp.eq.f32.partialorder %v816, 8.507059e+37
    %v818 = vand.u32 %v693, 2147483648
    %v819 = vor.u32 1.1754944e-38, %v818
    %v820 = vsel %vm817, %v819, %v815
    %v821 = vmul.f32 1.0, %v820
    %v822 = vrcp.pop %v694
    %v823 = vmul.f32 %v694, %v822
    %v824 = vsub.f32 1.0, %v823
    %v825 = vmul.f32 %v822, %v824
    %v826 = vadd.f32 %v822, %v825
    %vm827 = vweird.f32 %v694
    %vm828 = vweird.f32 %v822
    %vm829 = vmor %vm827, %vm828
    %v830 = vsel %vm829, %v822, %v826
    %v831 = vand.u32 2147483647, %v694
    %vm832 = vcmp.eq.f32.partialorder %v831, 8.507059e+37
    %v833 = vand.u32 %v694, 2147483648
    %v834 = vor.u32 1.1754944e-38, %v833
    %v835 = vsel %vm832, %v834, %v830
    %v836 = vmul.f32 1.0, %v835
    %v837 = vrcp.pop %v695
    %v838 = vmul.f32 %v695, %v837
    %v839 = vsub.f32 1.0, %v838
    %v840 = vmul.f32 %v837, %v839
    %v841 = vadd.f32 %v837, %v840
    %vm842 = vweird.f32 %v695
    %vm843 = vweird.f32 %v837
    %vm844 = vmor %vm842, %vm843
    %v845 = vsel %vm844, %v837, %v841
    %v846 = vand.u32 2147483647, %v695
    %vm847 = vcmp.eq.f32.partialorder %v846, 8.507059e+37
    %v848 = vand.u32 %v695, 2147483648
    %v849 = vor.u32 1.1754944e-38, %v848
    %v850 = vsel %vm847, %v849, %v845
    %v851 = vmul.f32 1.0, %v850
    %v852 = vrcp.pop %v696
    %v853 = vmul.f32 %v696, %v852
    %v854 = vsub.f32 1.0, %v853
    %v855 = vmul.f32 %v852, %v854
    %v856 = vadd.f32 %v852, %v855
    %vm857 = vweird.f32 %v696
    %vm858 = vweird.f32 %v852
    %vm859 = vmor %vm857, %vm858
    %v860 = vsel %vm859, %v852, %v856
    %v861 = vand.u32 2147483647, %v696
    %vm862 = vcmp.eq.f32.partialorder %v861, 8.507059e+37
    %v863 = vand.u32 %v696, 2147483648
    %v864 = vor.u32 1.1754944e-38, %v863
    %v865 = vsel %vm862, %v864, %v860
    %v866 = vmul.f32 1.0, %v865
    %v867 = vrcp.pop %v697
    %v868 = vmul.f32 %v697, %v867
    %v869 = vsub.f32 1.0, %v868
    %v870 = vmul.f32 %v867, %v869
    %v871 = vadd.f32 %v867, %v870
    %vm872 = vweird.f32 %v697
    %vm873 = vweird.f32 %v867
    %vm874 = vmor %vm872, %vm873
    %v875 = vsel %vm874, %v867, %v871
    %v876 = vand.u32 2147483647, %v697
    %vm877 = vcmp.eq.f32.partialorder %v876, 8.507059e+37
    %v878 = vand.u32 %v697, 2147483648
    %v879 = vor.u32 1.1754944e-38, %v878
    %v880 = vsel %vm877, %v879, %v875
    %v881 = vmul.f32 1.0, %v880
    %v882 = vrcp.pop %v698
    %v883 = vmul.f32 %v698, %v882
    %v884 = vsub.f32 1.0, %v883
    %v885 = vmul.f32 %v882, %v884
    %v886 = vadd.f32 %v882, %v885
    %vm887 = vweird.f32 %v698
    %vm888 = vweird.f32 %v882
    %vm889 = vmor %vm887, %vm888
    %v890 = vsel %vm889, %v882, %v886
    %v891 = vand.u32 2147483647, %v698
    %vm892 = vcmp.eq.f32.partialorder %v891, 8.507059e+37
    %v893 = vand.u32 %v698, 2147483648
    %v894 = vor.u32 1.1754944e-38, %v893
    %v895 = vsel %vm892, %v894, %v890
    %v896 = vmul.f32 1.0, %v895
    %v897 = vrcp.pop %v699
    %v898 = vmul.f32 %v699, %v897
    %v899 = vsub.f32 1.0, %v898
    %v900 = vmul.f32 %v897, %v899
    %v901 = vadd.f32 %v897, %v900
    %vm902 = vweird.f32 %v699
    %vm903 = vweird.f32 %v897
    %vm904 = vmor %vm902, %vm903
    %v905 = vsel %vm904, %v897, %v901
    %v906 = vand.u32 2147483647, %v699
    %vm907 = vcmp.eq.f32.partialorder %v906, 8.507059e+37
    %v908 = vand.u32 %v699, 2147483648
    %v909 = vor.u32 1.1754944e-38, %v908
    %v910 = vsel %vm907, %v909, %v905
    %v911 = vmul.f32 1.0, %v910
    %v912 = vrcp.pop %v700
    %v913 = vmul.f32 %v700, %v912
    %v914 = vsub.f32 1.0, %v913
    %v915 = vmul.f32 %v912, %v914
    %v916 = vadd.f32 %v912, %v915
    %vm917 = vweird.f32 %v700
    %vm918 = vweird.f32 %v912
    %vm919 = vmor %vm917, %vm918
    %v920 = vsel %vm919, %v912, %v916
    %v921 = vand.u32 2147483647, %v700
    %vm922 = vcmp.eq.f32.partialorder %v921, 8.507059e+37
    %v923 = vand.u32 %v700, 2147483648
    %v924 = vor.u32 1.1754944e-38, %v923
    %v925 = vsel %vm922, %v924, %v920
    %v926 = vmul.f32 1.0, %v925
    %v927 = vrcp.pop %v701
    %v928 = vmul.f32 %v701, %v927
    %v929 = vsub.f32 1.0, %v928
    %v930 = vmul.f32 %v927, %v929
    %v931 = vadd.f32 %v927, %v930
    %vm932 = vweird.f32 %v701
    %vm933 = vweird.f32 %v927
    %vm934 = vmor %vm932, %vm933
    %v935 = vsel %vm934, %v927, %v931
    %v936 = vand.u32 2147483647, %v701
    %vm937 = vcmp.eq.f32.partialorder %v936, 8.507059e+37
    %v938 = vand.u32 %v701, 2147483648
    %v939 = vor.u32 1.1754944e-38, %v938
    %v940 = vsel %vm937, %v939, %v935
    %v941 = vmul.f32 1.0, %v940
    %v958 = vperm.slane %v716, %v478
    %v959 = vperm.slane %v731, %v480
    %v960 = vsel %vm482, %v959, %v958
    %v961 = vperm.slane %v746, %v484
    %v962 = vsel %vm486, %v961, %v960
    %v963 = vperm.slane %v761, %v488
    %v964 = vsel %vm490, %v963, %v962
    %v965 = vperm.slane %v776, %v492
    %v966 = vsel %vm494, %v965, %v964
    %v967 = vperm.slane %v791, %v496
    %v968 = vsel %vm498, %v967, %v966
    %v969 = vperm.slane %v806, %v500
    %v970 = vsel %vm502, %v969, %v968
    %v971 = vperm.slane %v821, %v504
    %v972 = vsel %vm506, %v971, %v970
    %v973 = vperm.slane %v836, %v508
    %v974 = vsel %vm510, %v973, %v972
    %v975 = vperm.slane %v851, %v512
    %v976 = vsel %vm514, %v975, %v974
    %v977 = vperm.slane %v866, %v516
    %v978 = vsel %vm518, %v977, %v976
    %v979 = vperm.slane %v881, %v520
    %v980 = vsel %vm522, %v979, %v978
    %v981 = vperm.slane %v896, %v524
    %v982 = vsel %vm526, %v981, %v980
    %v983 = vperm.slane %v911, %v528
    %v984 = vsel %vm530, %v983, %v982
    %v985 = vperm.slane %v926, %v532
    %v986 = vsel %vm534, %v985, %v984
    %v987 = vperm.slane %v941, %v536
    %v988 = vsel %vm538, %v987, %v986
    %990 = vst [vmem:[#allocation9] sm:$0x1] %v988
    // Predicated region
    $region26: #{tpu_custom_call.1} parent=1 // pred_check
      _
    $region27: #{tpu_custom_call.1} parent=1 // pred_check_branch
      %992 = sbr.rel (0) target = $region29
    $region28: #{tpu_custom_call.1} parent=1 // pred_region
      %994 = vsyncadd [#allocation5], 0
      %s996 = sshll.u32 [#allocation8], 4
      %s997 = int_to_ptr.vmem [resolvable:$true] %s996
      %s998 = sshll.u32 %s4, 4
      %s999 = int_to_ptr.hbm [resolvable:$true] %s998
      %1001 = dma.vmem_to_hbm [thread:$0]  %s997, 16, %s999, [#allocation5]
    $region29: #{tpu_custom_call.1} parent=1 // pred_fallthru
      _
    // Predicated region
    $region30: #{tpu_custom_call.1} parent=1 // pred_check
      _
    $region31: #{tpu_custom_call.1} parent=1 // pred_check_branch
      %1003 = sbr.rel (0) target = $region33
    $region32: #{tpu_custom_call.1} parent=1 // pred_region
      %1005 = vsyncadd [#allocation10], 0
      %s1007 = sshll.u32 [#allocation9], 4
      %s1008 = int_to_ptr.vmem [resolvable:$true] %s1007
      %s1009 = sshll.u32 %s5, 4
      %s1010 = int_to_ptr.hbm [resolvable:$true] %s1009
      %1012 = dma.vmem_to_hbm [thread:$0]  %s1008, 16, %s1010, [#allocation10]
    $region33: #{tpu_custom_call.1} parent=1 // pred_fallthru
      _
    // Predicated region
    $region34: #{tpu_custom_call.1} parent=1 // pred_check
      _
    $region35: #{tpu_custom_call.1} parent=1 // pred_check_branch
      %1014 = sbr.rel (0) target = $region37
    $region36: #{tpu_custom_call.1} parent=1 // pred_region
      %1016 = dma.done [#allocation5], 16
    $region37: #{tpu_custom_call.1} parent=1 // pred_fallthru
      _
    // Predicated region
    $region38: #{tpu_custom_call.1} parent=1 // pred_check
      _
    $region39: #{tpu_custom_call.1} parent=1 // pred_check_branch
      %1018 = sbr.rel (0) target = $region41
    $region40: #{tpu_custom_call.1} parent=1 // pred_region
      %1020 = dma.done [#allocation10], 16
    $region41: #{tpu_custom_call.1} parent=1 // pred_fallthru
      _
    %1021 = vsyncpa [#allocation4], 1
    %1022 = vsyncpa [#allocation7], 1
    %1023 = vsyncpa [#allocation5], 1
    %1024 = vsyncpa [#allocation10], 1

</llo_original>
